<compile_context>
chip_gen: v7x
topology: tpu7x:2x2x1
jax: 0.10.0
libtpu: 0.0.40
codegen_flags: <defaults>
</compile_context>

<pallas_src>
import functools

import jax
import jax.numpy as jnp
from jax.experimental import pallas as pl
from jax.experimental.pallas import tpu as pltpu


def _round_up(x, m):
    return ((x + m - 1) // m) * m


def _cdiv(a, b):
    return -(-a // b)


def _tpu_has_bf16_eup():
    """bf16 transcendentals exist on v6e/v7x but not v5e/v4."""
    try:
        kind = jax.devices()[0].device_kind.lower()
    except Exception:
        return False
    return ("v6" in kind) or ("v7" in kind)


# ----------------------------------------------------------------------------
# Kernel: fused actor+critic forward, log_prob(action), entropy, value.
# Batch lives on the LANE axis for all intermediates and the output.
# ----------------------------------------------------------------------------
def actor_critic_kernel(states_ref, actions_ref, w_ref, b_ref, out_ref,
                        *, S, H, A, use_bf16):
    H2 = 2 * H
    o1 = 0
    o2 = o1 + _round_up(H2, 8)
    o3 = o2 + _round_up(H2, 8)

    x = states_ref[...]                    # (TB, S)  f32, streamed untransposed
    acts = actions_ref[...]                # (1, TB)  int32

    # Packed parameter slabs (static, sublane-aligned slices).
    w1 = w_ref[o1:o1 + H2, 0:S]            # (2H, S)   [actor ; critic]
    w2 = w_ref[o2:o2 + H2, 0:H2]           # (2H, 2H)  block-diagonal
    w3 = w_ref[o3:o3 + A + 1, 0:H2]        # (A+1, 2H) block-structured
    b1 = b_ref[0:H2, 0:1]                  # (2H, 1)
    b2 = b_ref[0:H2, 1:2]                  # (2H, 1)
    b3 = b_ref[0:A + 1, 2:3]               # (A+1, 1)

    def act(pre):
        # bf16 tanh on v6e/v7x halves the dominant EUP load; f32 on v5e.
        if use_bf16:
            return jnp.tanh(pre.astype(jnp.bfloat16)).astype(jnp.float32)
        return jnp.tanh(pre)

    # Layer 1: contract states on their feature (lane) axis -> (2H, TB).
    # A @ B^T form keeps the batch on lanes without a wrapper-side transpose.
    pre1 = jax.lax.dot_general(
        w1, x, dimension_numbers=(((1,), (1,)), ((), ())),
        preferred_element_type=jnp.float32) + b1
    h = act(pre1)
    h = act(jnp.dot(w2, h, preferred_element_type=jnp.float32) + b2)
    y = jnp.dot(w3, h, preferred_element_type=jnp.float32) + b3      # (A+1, TB)

    logits = y[0:A, :]                     # (A, TB)
    value = y[A:A + 1, :]                  # (1, TB)

    # log-softmax over the action (sublane) axis; reuse exp(z) for probs.
    m = jnp.max(logits, axis=0, keepdims=True)
    z = logits - m
    exp_z = jnp.exp(z)
    sum_exp = jnp.sum(exp_z, axis=0, keepdims=True)
    log_probs = z - jnp.log(sum_exp)                                  # (A, TB)
    probs = exp_z * pl.reciprocal(sum_exp, approx=True)               # (A, TB)

    # log_prob of the taken action via one-hot select along sublanes.
    row_ids = jax.lax.broadcasted_iota(jnp.int32, (A, logits.shape[1]), 0)
    one_hot = (row_ids == acts).astype(jnp.float32)
    logp = jnp.sum(one_hot * log_probs, axis=0, keepdims=True)        # (1, TB)
    entropy = -jnp.sum(probs * log_probs, axis=0, keepdims=True)      # (1, TB)

    # Three direct lane-dense row stores (no sublane concat copy).
    out_ref[0:1, :] = logp
    out_ref[1:2, :] = value
    out_ref[2:3, :] = entropy


# ----------------------------------------------------------------------------
# Parameter construction / packing (PyTorch Linear layout: weight (out, in)).
# ----------------------------------------------------------------------------
def make_params(state_dim, action_dim, hidden, key):
    keys = jax.random.split(key, 12)

    def lin(kw, kb, fan_in, fan_out):
        bound = 1.0 / jnp.sqrt(jnp.float32(fan_in))
        w = jax.random.uniform(kw, (fan_out, fan_in), jnp.float32, -bound, bound)
        b = jax.random.uniform(kb, (fan_out,), jnp.float32, -bound, bound)
        return w, b

    wa1, ba1 = lin(keys[0], keys[1], state_dim, hidden)
    wa2, ba2 = lin(keys[2], keys[3], hidden, hidden)
    wa3, ba3 = lin(keys[4], keys[5], hidden, action_dim)
    wc1, bc1 = lin(keys[6], keys[7], state_dim, hidden)
    wc2, bc2 = lin(keys[8], keys[9], hidden, hidden)
    wc3, bc3 = lin(keys[10], keys[11], hidden, 1)
    return (wa1, ba1, wa2, ba2, wa3, ba3, wc1, bc1, wc2, bc2, wc3, bc3)


def pack_params(raw, state_dim, action_dim, hidden):
    (wa1, ba1, wa2, ba2, wa3, ba3, wc1, bc1, wc2, bc2, wc3, bc3) = raw
    S, H, A = state_dim, hidden, action_dim
    H2 = 2 * H
    o2 = _round_up(H2, 8)
    o3 = o2 + _round_up(H2, 8)
    rows = o3 + _round_up(A + 1, 8)
    width = max(S, H2)

    w_buf = jnp.zeros((rows, width), jnp.float32)
    # layer 1: actor / critic stacked along output rows
    w_buf = w_buf.at[0:H, 0:S].set(wa1)
    w_buf = w_buf.at[H:H2, 0:S].set(wc1)
    # layer 2: block-diagonal
    w_buf = w_buf.at[o2:o2 + H, 0:H].set(wa2)
    w_buf = w_buf.at[o2 + H:o2 + H2, H:H2].set(wc2)
    # layer 3: logits read actor half, value reads critic half
    w_buf = w_buf.at[o3:o3 + A, 0:H].set(wa3)
    w_buf = w_buf.at[o3 + A:o3 + A + 1, H:H2].set(wc3)

    b_buf = jnp.zeros((_round_up(H2, 8), 3), jnp.float32)
    b_buf = b_buf.at[0:H, 0].set(ba1)
    b_buf = b_buf.at[H:H2, 0].set(bc1)
    b_buf = b_buf.at[0:H, 1].set(ba2)
    b_buf = b_buf.at[H:H2, 1].set(bc2)
    b_buf = b_buf.at[0:A, 2].set(ba3)
    b_buf = b_buf.at[A, 2].set(bc3[0])
    return w_buf, b_buf


# ----------------------------------------------------------------------------
# Wrapper: Pallas equivalent of 行动者与评论家.评估(状态, 动作).
# Returns (log_prob_of_actions, squeezed_state_values, entropy).
# ----------------------------------------------------------------------------
def evaluate(states, actions, w_buf, b_buf, *, state_dim, action_dim, hidden,
             use_bf16=None):
    B = states.shape[0]
    S, H, A = state_dim, hidden, action_dim
    if use_bf16 is None:
        use_bf16 = _tpu_has_bf16_eup()

    LANE = 128
    MAX_TILE = 8192                         # big tiles amortize per-step overhead

    b_lane = _round_up(B, LANE)             # pad only to lane granularity
    num_tiles = max(1, _cdiv(b_lane, MAX_TILE))
    if b_lane >= 2 * LANE:
        num_tiles = max(num_tiles, 2)       # let v7x's two TCs split the batch
    tile_b = _round_up(_cdiv(b_lane, num_tiles), LANE)
    b_pad = tile_b * num_tiles

    states_p = states
    actions_row = actions.reshape(1, B).astype(jnp.int32)
    if b_pad != B:
        states_p = jnp.pad(states_p, ((0, b_pad - B), (0, 0)))
        actions_row = jnp.pad(actions_row, ((0, 0), (0, b_pad - B)))

    kernel = functools.partial(actor_critic_kernel, S=S, H=H, A=A,
                               use_bf16=use_bf16)

    out = pl.pallas_call(
        kernel,
        out_shape=jax.ShapeDtypeStruct((3, b_pad), jnp.float32),
        grid=(num_tiles,),
        in_specs=[
            pl.BlockSpec((tile_b, S), lambda i: (i, 0)),        # states (streamed)
            pl.BlockSpec((1, tile_b), lambda i: (0, i)),        # actions (streamed)
            pl.BlockSpec(w_buf.shape, lambda i: (0, 0)),        # weights (resident)
            pl.BlockSpec(b_buf.shape, lambda i: (0, 0)),        # biases  (resident)
        ],
        out_specs=pl.BlockSpec((3, tile_b), lambda i: (0, i)),
        compiler_params=pltpu.CompilerParams(
            dimension_semantics=("parallel",),
            vmem_limit_bytes=32 * 1024 * 1024,   # well under v7x's 64 MiB physical
        ),
    )(states_p, actions_row, w_buf, b_buf)

    out = out[:, :B]
    # matches: (动作_概率质量_对数_列表, torch.squeeze(状态评判值), 分布_熵)
    return out[0], out[1], out[2]


# ----------------------------------------------------------------------------
# Pure-JAX reference for correctness checking (PyTorch semantics).
# ----------------------------------------------------------------------------
def evaluate_ref(states, actions, raw):
    (wa1, ba1, wa2, ba2, wa3, ba3, wc1, bc1, wc2, bc2, wc3, bc3) = raw
    h = jnp.tanh(states @ wa1.T + ba1)
    h = jnp.tanh(h @ wa2.T + ba2)
    logits = h @ wa3.T + ba3
    logp_all = jax.nn.log_softmax(logits, axis=-1)
    probs = jnp.exp(logp_all)
    logp = jnp.take_along_axis(logp_all, actions.reshape(-1, 1), axis=-1)[:, 0]
    entropy = -jnp.sum(probs * logp_all, axis=-1)
    c = jnp.tanh(states @ wc1.T + bc1)
    c = jnp.tanh(c @ wc2.T + bc2)
    value = jnp.squeeze(c @ wc3.T + bc3)
    return logp, value, entropy


if __name__ == "__main__":
    state_dim, action_dim, hidden = 8, 4, 32
    batch = 8

    key = jax.random.PRNGKey(0)
    kp, ks, ka = jax.random.split(key, 3)

    raw_params = make_params(state_dim, action_dim, hidden, kp)
    w_buf, b_buf = pack_params(raw_params, state_dim, action_dim, hidden)

    states = jax.random.normal(ks, (batch, state_dim), jnp.float32)
    actions = jax.random.randint(ka, (batch,), 0, action_dim, jnp.int32)

    use_bf16 = _tpu_has_bf16_eup()
    logp, value, entropy = evaluate(
        states, actions, w_buf, b_buf,
        state_dim=state_dim, action_dim=action_dim, hidden=hidden,
        use_bf16=use_bf16)
    jax.block_until_ready((logp, value, entropy))

    logp_r, value_r, entropy_r = evaluate_ref(states, actions, raw_params)
    tol = 5e-2 if use_bf16 else 5e-3
    assert jnp.allclose(logp, logp_r, atol=tol, rtol=tol)
    assert jnp.allclose(value, value_r, atol=tol, rtol=tol)
    assert jnp.allclose(entropy, entropy_r, atol=tol, rtol=tol)

    print("KERNEL_OK")
</pallas_src>

<mosaic_0001>
module attributes {stable_mosaic.version = 11 : i64} {
  func.func @actor_critic_kernel(%arg0: i32, %arg1: memref<128x8xf32, #tpu.memory_space<vmem>>, %arg2: memref<1x128xi32, #tpu.memory_space<vmem>>, %arg3: memref<136x64xf32, #tpu.memory_space<vmem>>, %arg4: memref<64x3xf32, #tpu.memory_space<vmem>>, %arg5: memref<3x128xf32, #tpu.memory_space<vmem>>) attributes {dimension_semantics = [#tpu.dimension_semantics<parallel>], iteration_bounds = array<i64: 1>, scalar_prefetch = 0 : i64, scratch_operands = 0 : i64, tpu.core_type = #tpu.core_type<tc>, window_params = [{transform_indices = @transform_0, window_bounds = array<i64: 128, 8>}, {transform_indices = @transform_1, window_bounds = array<i64: 1, 128>}, {pipeline_mode = #tpu.pipeline_mode<synchronous>, transform_indices = @transform_2, window_bounds = array<i64: 136, 64>}, {pipeline_mode = #tpu.pipeline_mode<synchronous>, transform_indices = @transform_3, window_bounds = array<i64: 64, 3>}, {transform_indices = @transform_4, window_bounds = array<i64: 3, 128>}]} {
    %c0 = arith.constant 0 : index
    %c0_0 = arith.constant 0 : index
    %0 = vector.load %arg1[%c0, %c0_0] : memref<128x8xf32, #tpu.memory_space<vmem>>, vector<128x8xf32>
    %c0_1 = arith.constant 0 : index
    %c0_2 = arith.constant 0 : index
    %1 = vector.load %arg2[%c0_1, %c0_2] : memref<1x128xi32, #tpu.memory_space<vmem>>, vector<1x128xi32>
    %c0_3 = arith.constant 0 : index
    %c0_4 = arith.constant 0 : index
    %2 = vector.load %arg3[%c0_3, %c0_4] : memref<136x64xf32, #tpu.memory_space<vmem>>, vector<64x8xf32>
    %c64 = arith.constant 64 : index
    %c0_5 = arith.constant 0 : index
    %3 = vector.load %arg3[%c64, %c0_5] : memref<136x64xf32, #tpu.memory_space<vmem>>, vector<64x64xf32>
    %c128 = arith.constant 128 : index
    %c0_6 = arith.constant 0 : index
    %4 = vector.load %arg3[%c128, %c0_6] : memref<136x64xf32, #tpu.memory_space<vmem>>, vector<5x64xf32>
    %c0_7 = arith.constant 0 : index
    %c0_8 = arith.constant 0 : index
    %5 = vector.load %arg4[%c0_7, %c0_8] : memref<64x3xf32, #tpu.memory_space<vmem>>, vector<64x1xf32>
    %c0_9 = arith.constant 0 : index
    %c1 = arith.constant 1 : index
    %6 = vector.load %arg4[%c0_9, %c1] : memref<64x3xf32, #tpu.memory_space<vmem>>, vector<64x1xf32>
    %c0_10 = arith.constant 0 : index
    %c2 = arith.constant 2 : index
    %7 = vector.load %arg4[%c0_10, %c2] : memref<64x3xf32, #tpu.memory_space<vmem>>, vector<5x1xf32>
    %cst = arith.constant dense<0.000000e+00> : vector<64x128xf32>
    %8 = tpu.matmul %2, %0, %cst {dimension_numbers = #tpu.dot_dimension_numbers<[1], [1], [0], [0], [0, 0, 1, 0], [], []>} : vector<64x8xf32>, vector<128x8xf32>, vector<64x128xf32> -> vector<64x128xf32>
    %9 = vector.broadcast %5 : vector<64x1xf32> to vector<64x128xf32>
    %10 = arith.addf %8, %9 : vector<64x128xf32>
    %11 = math.tanh %10 : vector<64x128xf32>
    %cst_11 = arith.constant dense<0.000000e+00> : vector<64x128xf32>
    %12 = tpu.matmul %3, %11, %cst_11 {dimension_numbers = #tpu.dot_dimension_numbers<[1], [0], [0], [1], [0, 0, 1, 1], [], []>} : vector<64x64xf32>, vector<64x128xf32>, vector<64x128xf32> -> vector<64x128xf32>
    %13 = vector.broadcast %6 : vector<64x1xf32> to vector<64x128xf32>
    %14 = arith.addf %12, %13 : vector<64x128xf32>
    %15 = math.tanh %14 : vector<64x128xf32>
    %cst_12 = arith.constant dense<0.000000e+00> : vector<5x128xf32>
    %16 = tpu.matmul %4, %15, %cst_12 {dimension_numbers = #tpu.dot_dimension_numbers<[1], [0], [0], [1], [0, 0, 1, 1], [], []>} : vector<5x64xf32>, vector<64x128xf32>, vector<5x128xf32> -> vector<5x128xf32>
    %17 = vector.broadcast %7 : vector<5x1xf32> to vector<5x128xf32>
    %18 = arith.addf %16, %17 : vector<5x128xf32>
    %19 = vector.extract_strided_slice %18 {offsets = [0, 0], sizes = [4, 128], strides = [1, 1]} : vector<5x128xf32> to vector<4x128xf32>
    %20 = vector.extract_strided_slice %18 {offsets = [4, 0], sizes = [1, 128], strides = [1, 1]} : vector<5x128xf32> to vector<1x128xf32>
    %cst_13 = arith.constant dense<0xFF800000> : vector<128xf32>
    %21 = vector.multi_reduction <maximumf>, %19, %cst_13 [0] : vector<4x128xf32> to vector<128xf32>
    %22 = vector.shape_cast %21 : vector<128xf32> to vector<1x128xf32>
    %23 = vector.broadcast %22 : vector<1x128xf32> to vector<4x128xf32>
    %24 = arith.subf %19, %23 : vector<4x128xf32>
    %25 = math.exp %24 : vector<4x128xf32>
    %cst_14 = arith.constant dense<0.000000e+00> : vector<128xf32>
    %26 = vector.multi_reduction <add>, %25, %cst_14 [0] : vector<4x128xf32> to vector<128xf32>
    %27 = vector.shape_cast %26 : vector<128xf32> to vector<1x128xf32>
    %28 = math.log %27 : vector<1x128xf32>
    %29 = vector.broadcast %28 : vector<1x128xf32> to vector<4x128xf32>
    %30 = arith.subf %24, %29 : vector<4x128xf32>
    %31 = tpu.reciprocal %27 {approx = true} : vector<1x128xf32> -> vector<1x128xf32>
    %32 = vector.broadcast %31 : vector<1x128xf32> to vector<4x128xf32>
    %33 = arith.mulf %25, %32 : vector<4x128xf32>
    %34 = tpu.iota {dimensions = array<i32: 0>} : vector<4x128xi32>
    %35 = vector.broadcast %1 : vector<1x128xi32> to vector<4x128xi32>
    %36 = arith.cmpi eq, %34, %35 : vector<4x128xi32>
    %37 = arith.extui %36 : vector<4x128xi1> to vector<4x128xi32>
    %38 = arith.sitofp %37 : vector<4x128xi32> to vector<4x128xf32>
    %39 = arith.mulf %38, %30 : vector<4x128xf32>
    %cst_15 = arith.constant dense<0.000000e+00> : vector<128xf32>
    %40 = vector.multi_reduction <add>, %39, %cst_15 [0] : vector<4x128xf32> to vector<128xf32>
    %41 = vector.shape_cast %40 : vector<128xf32> to vector<1x128xf32>
    %42 = arith.mulf %33, %30 : vector<4x128xf32>
    %cst_16 = arith.constant dense<0.000000e+00> : vector<128xf32>
    %43 = vector.multi_reduction <add>, %42, %cst_16 [0] : vector<4x128xf32> to vector<128xf32>
    %44 = vector.shape_cast %43 : vector<128xf32> to vector<1x128xf32>
    %cst_17 = arith.constant 0.000000e+00 : f32
    %45 = vector.broadcast %cst_17 : f32 to vector<1x128xf32>
    %46 = arith.subf %45, %44 : vector<1x128xf32>
    %c0_18 = arith.constant 0 : index
    %c0_19 = arith.constant 0 : index
    %47 = vector.load %arg5[%c0_18, %c0_19] : memref<3x128xf32, #tpu.memory_space<vmem>>, vector<1x128xf32>
    tpu.vector_store %arg5[%c0_18, %c0_19], %41 {strides = array<i32>} : memref<3x128xf32, #tpu.memory_space<vmem>>, vector<1x128xf32>,
    %c1_20 = arith.constant 1 : index
    %c0_21 = arith.constant 0 : index
    %48 = vector.load %arg5[%c1_20, %c0_21] : memref<3x128xf32, #tpu.memory_space<vmem>>, vector<1x128xf32>
    tpu.vector_store %arg5[%c1_20, %c0_21], %20 {strides = array<i32>} : memref<3x128xf32, #tpu.memory_space<vmem>>, vector<1x128xf32>,
    %c2_22 = arith.constant 2 : index
    %c0_23 = arith.constant 0 : index
    %49 = vector.load %arg5[%c2_22, %c0_23] : memref<3x128xf32, #tpu.memory_space<vmem>>, vector<1x128xf32>
    tpu.vector_store %arg5[%c2_22, %c0_23], %46 {strides = array<i32>} : memref<3x128xf32, #tpu.memory_space<vmem>>, vector<1x128xf32>,
    return
  }
  func.func @transform_0(%arg0: i32) -> (i32, i32) {
    %c0_i32 = arith.constant 0 : i32
    %c0_i32_0 = arith.constant 0 : i32
    return %arg0, %c0_i32 : i32, i32
  }
  func.func @transform_1(%arg0: i32) -> (i32, i32) {
    %c0_i32 = arith.constant 0 : i32
    %c0_i32_0 = arith.constant 0 : i32
    return %c0_i32, %arg0 : i32, i32
  }
  func.func @transform_2(%arg0: i32) -> (i32, i32) {
    %c0_i32 = arith.constant 0 : i32
    %c0_i32_0 = arith.constant 0 : i32
    %c0_i32_1 = arith.constant 0 : i32
    return %c0_i32, %c0_i32_0 : i32, i32
  }
  func.func @transform_3(%arg0: i32) -> (i32, i32) {
    %c0_i32 = arith.constant 0 : i32
    %c0_i32_0 = arith.constant 0 : i32
    %c0_i32_1 = arith.constant 0 : i32
    return %c0_i32, %c0_i32_0 : i32, i32
  }
  func.func @transform_4(%arg0: i32) -> (i32, i32) {
    %c0_i32 = arith.constant 0 : i32
    %c0_i32_0 = arith.constant 0 : i32
    return %c0_i32, %arg0 : i32, i32
  }
}

</mosaic_0001>

<llo_original>
// kernel: tpu_custom_call.1
$region0: #{tpu_custom_call.1}
  #allocation0 [shape = 'u32[]', space=smem, size = 0x4, offset = 0x4, fixed_abs, tag = 'smem constant byte address 0x4 - core index']
  #allocation1 [shape = 'u32[144,128]{1,0:T(1,128)}', space=vmem, size = 0x12000, scoped, tag = 'internal scratch']
  %s0 = inlined_call_operand.vmem [shape: f32[128,8], index: 0, kind: input, shape index: {}]
  %s1 = inlined_call_operand.vmem [shape: s32[1,128], index: 1, kind: input, shape index: {}]
  %s2 = inlined_call_operand.vmem [shape: f32[136,64], index: 2, kind: input, shape index: {}]
  %s3 = inlined_call_operand.vmem [shape: f32[64,3], index: 3, kind: input, shape index: {}]
  %s4 = inlined_call_operand.hbm [shape: f32[3,128], index: 4, kind: output, shape index: {}]
  %s5 = sld [smem:[#allocation0]]
  $region26: #{tpu_custom_call.1} parent=0
    _
  %s7 = ssub.s32 1, %s5
  %s8 = scalar_select 0, %s7, %s5
  $region1: #{tpu_custom_call.1} parent=0
    #allocation2 [shape = 'u8[2048]{0}', space=vmem, size = 0x800, scoped, tag = 'output window, operand 0, single buffered']
    #allocation3 [shape = 's32[1]{0}', space=sflag, size = 0x4, scoped, tag = 'scoped memory for tpu_custom_call.1']
    %9 = vsyncpa [#allocation3], 0
    // Predicated region
    $region2: #{tpu_custom_call.1} parent=1 // pred_check
      _
    $region3: #{tpu_custom_call.1} parent=1 // pred_check_branch
      %11 = sbr.rel (0) target = $region5
    $region4: #{tpu_custom_call.1} parent=1 // pred_region
      _
    $region5: #{tpu_custom_call.1} parent=1 // pred_fallthru
      _
    // Predicated region
    $region6: #{tpu_custom_call.1} parent=1 // pred_check
      _
    $region7: #{tpu_custom_call.1} parent=1 // pred_check_branch
      %13 = sbr.rel (0) target = $region9
    $region8: #{tpu_custom_call.1} parent=1 // pred_region
      _
    $region9: #{tpu_custom_call.1} parent=1 // pred_fallthru
      _
    // Predicated region
    $region10: #{tpu_custom_call.1} parent=1 // pred_check
      _
    $region11: #{tpu_custom_call.1} parent=1 // pred_check_branch
      %15 = sbr.rel (0) target = $region13
    $region12: #{tpu_custom_call.1} parent=1 // pred_region
      _
    $region13: #{tpu_custom_call.1} parent=1 // pred_fallthru
      _
    // Predicated region
    $region14: #{tpu_custom_call.1} parent=1 // pred_check
      _
    $region15: #{tpu_custom_call.1} parent=1 // pred_check_branch
      %17 = sbr.rel (0) target = $region17
    $region16: #{tpu_custom_call.1} parent=1 // pred_region
      _
    $region17: #{tpu_custom_call.1} parent=1 // pred_fallthru
      _
    %v18 = vld [vmem:[%s0] sm:$0xff]
    %v19 = vld [vmem:[%s0 + $0x8] sm:$0xff]
    %v20 = vld [vmem:[%s0 + $0x10] sm:$0xff]
    %v21 = vld [vmem:[%s0 + $0x18] sm:$0xff]
    %v22 = vld [vmem:[%s0 + $0x20] sm:$0xff]
    %v23 = vld [vmem:[%s0 + $0x28] sm:$0xff]
    %v24 = vld [vmem:[%s0 + $0x30] sm:$0xff]
    %v25 = vld [vmem:[%s0 + $0x38] sm:$0xff]
    %v26 = vld [vmem:[%s0 + $0x40] sm:$0xff]
    %v27 = vld [vmem:[%s0 + $0x48] sm:$0xff]
    %v28 = vld [vmem:[%s0 + $0x50] sm:$0xff]
    %v29 = vld [vmem:[%s0 + $0x58] sm:$0xff]
    %v30 = vld [vmem:[%s0 + $0x60] sm:$0xff]
    %v31 = vld [vmem:[%s0 + $0x68] sm:$0xff]
    %v32 = vld [vmem:[%s0 + $0x70] sm:$0xff]
    %v33 = vld [vmem:[%s0 + $0x78] sm:$0xff]
    %v34 = vld [vmem:[%s1] sm:$0x1]
    %v35 = vld [vmem:[%s2] sm:$0xff]
    %v36 = vld [vmem:[%s2 + $0x8] sm:$0xff]
    %v37 = vld [vmem:[%s2 + $0x10] sm:$0xff]
    %v38 = vld [vmem:[%s2 + $0x18] sm:$0xff]
    %v39 = vld [vmem:[%s2 + $0x20] sm:$0xff]
    %v40 = vld [vmem:[%s2 + $0x28] sm:$0xff]
    %v41 = vld [vmem:[%s2 + $0x30] sm:$0xff]
    %v42 = vld [vmem:[%s2 + $0x38] sm:$0xff]
    %v43 = vld [vmem:[%s2 + $0x40] sm:$0xff]
    %v44 = vld [vmem:[%s2 + $0x48] sm:$0xff]
    %v45 = vld [vmem:[%s2 + $0x50] sm:$0xff]
    %v46 = vld [vmem:[%s2 + $0x58] sm:$0xff]
    %v47 = vld [vmem:[%s2 + $0x60] sm:$0xff]
    %v48 = vld [vmem:[%s2 + $0x68] sm:$0xff]
    %v49 = vld [vmem:[%s2 + $0x70] sm:$0xff]
    %v50 = vld [vmem:[%s2 + $0x78] sm:$0xff]
    %v51 = vld [vmem:[%s2 + $0x80] sm:$0x1f]
    %v52 = vld [vmem:[%s3] sm:$0xff]
    %v53 = vld [vmem:[%s3 + $0x8] sm:$0xff]
    %v54 = vld [vmem:[%s3 + $0x10] sm:$0xff]
    %v55 = vld [vmem:[%s3 + $0x18] sm:$0xff]
    %v56 = vld [vmem:[%s3 + $0x20] sm:$0xff]
    %v57 = vld [vmem:[%s3 + $0x28] sm:$0xff]
    %v58 = vld [vmem:[%s3 + $0x30] sm:$0xff]
    %v59 = vld [vmem:[%s3 + $0x38] sm:$0xff]
    %v60 = vld [vmem:[%s3] sm:$0x1f]
    %62 = vset.pattern.permute.xlu0 0
    %63 = vperm.xlu0 %62, %v52
    %v64 = vpop.permute.xlu0 %63
    %67 = vset.pattern.permute.xlu0 0
    %68 = vperm.xlu0 %67, %v53
    %v69 = vpop.permute.xlu0 %68
    %72 = vset.pattern.permute.xlu0 0
    %73 = vperm.xlu0 %72, %v54
    %v74 = vpop.permute.xlu0 %73
    %77 = vset.pattern.permute.xlu0 0
    %78 = vperm.xlu0 %77, %v55
    %v79 = vpop.permute.xlu0 %78
    %82 = vset.pattern.permute.xlu0 0
    %83 = vperm.xlu0 %82, %v56
    %v84 = vpop.permute.xlu0 %83
    %87 = vset.pattern.permute.xlu0 0
    %88 = vperm.xlu0 %87, %v57
    %v89 = vpop.permute.xlu0 %88
    %92 = vset.pattern.permute.xlu0 0
    %93 = vperm.xlu0 %92, %v58
    %v94 = vpop.permute.xlu0 %93
    %97 = vset.pattern.permute.xlu0 0
    %98 = vperm.xlu0 %97, %v59
    %v99 = vpop.permute.xlu0 %98
    %vm101 = vcmask 64512
    %v103 = vsel %vm101, %v35, 0
    %v106 = vsel %vm101, %v36, 0
    %v109 = vsel %vm101, %v37, 0
    %v112 = vsel %vm101, %v38, 0
    %v115 = vsel %vm101, %v39, 0
    %v118 = vsel %vm101, %v40, 0
    %v121 = vsel %vm101, %v41, 0
    %v124 = vsel %vm101, %v42, 0
    %v127 = vsel %vm101, %v18, 0
    %v130 = vsel %vm101, %v19, 0
    %v133 = vsel %vm101, %v20, 0
    %v136 = vsel %vm101, %v21, 0
    %v139 = vsel %vm101, %v22, 0
    %v142 = vsel %vm101, %v23, 0
    %v145 = vsel %vm101, %v24, 0
    %v148 = vsel %vm101, %v25, 0
    %v151 = vsel %vm101, %v26, 0
    %v154 = vsel %vm101, %v27, 0
    %v157 = vsel %vm101, %v28, 0
    %v160 = vsel %vm101, %v29, 0
    %v163 = vsel %vm101, %v30, 0
    %v166 = vsel %vm101, %v31, 0
    %v169 = vsel %vm101, %v32, 0
    %v172 = vsel %vm101, %v33, 0
    %174 = vmatprep.subr.mxu0 0.0
    %175 = vmatpush1.xpose.msra.mxu0 %v127
    %176 = vmatprep.subr.mxu0 0.0
    %177 = vmatpush1.xpose.msra.mxu0 %v130
    %178 = vmatprep.subr.mxu0 0.0
    %179 = vmatpush1.xpose.msra.mxu0 %v133
    %180 = vmatprep.subr.mxu0 0.0
    %181 = vmatpush1.xpose.msra.mxu0 %v136
    %182 = vmatprep.subr.mxu0 0.0
    %183 = vmatpush1.xpose.msra.mxu0 %v139
    %184 = vmatprep.subr.mxu0 0.0
    %185 = vmatpush1.xpose.msra.mxu0 %v142
    %186 = vmatprep.subr.mxu0 0.0
    %187 = vmatpush1.xpose.msra.mxu0 %v145
    %188 = vmatprep.subr.mxu0 0.0
    %189 = vmatpush1.xpose.msra.mxu0 %v148
    %190 = vmatprep.subr.mxu0 0.0
    %191 = vmatpush1.xpose.msra.mxu0 %v151
    %192 = vmatprep.subr.mxu0 0.0
    %193 = vmatpush1.xpose.msra.mxu0 %v154
    %194 = vmatprep.subr.mxu0 0.0
    %195 = vmatpush1.xpose.msra.mxu0 %v157
    %196 = vmatprep.subr.mxu0 0.0
    %197 = vmatpush1.xpose.msra.mxu0 %v160
    %198 = vmatprep.subr.mxu0 0.0
    %199 = vmatpush1.xpose.msra.mxu0 %v163
    %200 = vmatprep.subr.mxu0 0.0
    %201 = vmatpush1.xpose.msra.mxu0 %v166
    %202 = vmatprep.subr.mxu0 0.0
    %203 = vmatpush1.xpose.msra.mxu0 %v169
    %204 = vmatprep.subr.mxu0 0.0
    %205 = vmatpush1.xpose.msra.mxu0 %v172
    %206 = vmatprep.subr.mxu0 0.0
    %207 = vmatpush1.xpose.msra.mxu0 0.0
    %208 = vmatprep.subr.mxu0 0.0
    %209 = vmatpush1.xpose.msra.mxu0 0.0
    %210 = vmatprep.subr.mxu0 0.0
    %211 = vmatpush1.xpose.msra.mxu0 0.0
    %212 = vmatprep.subr.mxu0 0.0
    %213 = vmatpush1.xpose.msra.mxu0 0.0
    %214 = vmatprep.subr.mxu0 0.0
    %215 = vmatpush1.xpose.msra.mxu0 0.0
    %216 = vmatprep.subr.mxu0 0.0
    %217 = vmatpush1.xpose.msra.mxu0 0.0
    %218 = vmatprep.subr.mxu0 0.0
    %219 = vmatpush1.xpose.msra.mxu0 0.0
    %220 = vmatprep.subr.mxu0 0.0
    %221 = vmatpush1.xpose.msra.mxu0 0.0
    %222 = vmatprep.subr.mxu0 0.0
    %223 = vmatpush1.xpose.msra.mxu0 0.0
    %224 = vmatprep.subr.mxu0 0.0
    %225 = vmatpush1.xpose.msra.mxu0 0.0
    %226 = vmatprep.subr.mxu0 0.0
    %227 = vmatpush1.xpose.msra.mxu0 0.0
    %228 = vmatprep.subr.mxu0 0.0
    %229 = vmatpush1.xpose.msra.mxu0 0.0
    %230 = vmatprep.subr.mxu0 0.0
    %231 = vmatpush1.xpose.msra.mxu0 0.0
    %232 = vmatprep.subr.mxu0 0.0
    %233 = vmatpush1.xpose.msra.mxu0 0.0
    %234 = vmatprep.subr.mxu0 0.0
    %235 = vmatpush1.xpose.msra.mxu0 0.0
    %236 = vmatprep.subr.mxu0 0.0
    %237 = vmatpush1.xpose.msra.mxu0 0.0
    %238 = vmatprep.mubr.f32.mxu0 0.0
    %239 = vmatmul.mubr.f32.gmra.mrb[0].mxu0 %v103
    %v240 = vpop.f32.mrb[0].mxu0
    %v241 = vadd.f32 %v64, %v240
    %v242 = vpop.f32.mrb[0].mxu0
    %243 = vmatprep.mubr.f32.mxu0 0.0
    %244 = vmatmul.mubr.f32.gmra.mrb[0].mxu0 %v106
    %v245 = vpop.f32.mrb[0].mxu0
    %v246 = vadd.f32 %v69, %v245
    %v247 = vpop.f32.mrb[0].mxu0
    %248 = vmatprep.mubr.f32.mxu0 0.0
    %249 = vmatmul.mubr.f32.gmra.mrb[0].mxu0 %v109
    %v250 = vpop.f32.mrb[0].mxu0
    %v251 = vadd.f32 %v74, %v250
    %v252 = vpop.f32.mrb[0].mxu0
    %253 = vmatprep.mubr.f32.mxu0 0.0
    %254 = vmatmul.mubr.f32.gmra.mrb[0].mxu0 %v112
    %v255 = vpop.f32.mrb[0].mxu0
    %v256 = vadd.f32 %v79, %v255
    %v257 = vpop.f32.mrb[0].mxu0
    %258 = vmatprep.mubr.f32.mxu0 0.0
    %259 = vmatmul.mubr.f32.gmra.mrb[0].mxu0 %v115
    %v260 = vpop.f32.mrb[0].mxu0
    %v261 = vadd.f32 %v84, %v260
    %v262 = vpop.f32.mrb[0].mxu0
    %263 = vmatprep.mubr.f32.mxu0 0.0
    %264 = vmatmul.mubr.f32.gmra.mrb[0].mxu0 %v118
    %v265 = vpop.f32.mrb[0].mxu0
    %v266 = vadd.f32 %v89, %v265
    %v267 = vpop.f32.mrb[0].mxu0
    %268 = vmatprep.mubr.f32.mxu0 0.0
    %269 = vmatmul.mubr.f32.gmra.mrb[0].mxu0 %v121
    %v270 = vpop.f32.mrb[0].mxu0
    %v271 = vadd.f32 %v94, %v270
    %v272 = vpop.f32.mrb[0].mxu0
    %273 = vmatprep.mubr.f32.mxu0 0.0
    %274 = vmatmul.mubr.f32.gmra.mrb[0].mxu0 %v124
    %v275 = vpop.f32.mrb[0].mxu0
    %v276 = vadd.f32 %v99, %v275
    %v277 = vpop.f32.mrb[0].mxu0
    %278 = vdwg.mxu0
    %v279 = vtanh.pop %v241
    %v280 = vtanh.pop %v246
    %v281 = vtanh.pop %v251
    %v282 = vtanh.pop %v256
    %v283 = vtanh.pop %v261
    %v284 = vtanh.pop %v266
    %v285 = vtanh.pop %v271
    %v286 = vtanh.pop %v276
    %287 = vset.pattern.permute.xlu0 1
    %288 = vperm.xlu0 %287, %v52
    %v289 = vpop.permute.xlu0 %288
    %291 = vset.pattern.permute.xlu0 1
    %292 = vperm.xlu0 %291, %v53
    %v293 = vpop.permute.xlu0 %292
    %295 = vset.pattern.permute.xlu0 1
    %296 = vperm.xlu0 %295, %v54
    %v297 = vpop.permute.xlu0 %296
    %299 = vset.pattern.permute.xlu0 1
    %300 = vperm.xlu0 %299, %v55
    %v301 = vpop.permute.xlu0 %300
    %303 = vset.pattern.permute.xlu0 1
    %304 = vperm.xlu0 %303, %v56
    %v305 = vpop.permute.xlu0 %304
    %307 = vset.pattern.permute.xlu0 1
    %308 = vperm.xlu0 %307, %v57
    %v309 = vpop.permute.xlu0 %308
    %311 = vset.pattern.permute.xlu0 1
    %312 = vperm.xlu0 %311, %v58
    %v313 = vpop.permute.xlu0 %312
    %315 = vset.pattern.permute.xlu0 1
    %316 = vperm.xlu0 %315, %v59
    %v317 = vpop.permute.xlu0 %316
    %vm319 = vcmask 523264
    %v321 = vsel %vm319, %v43, 0
    %v324 = vsel %vm319, %v44, 0
    %v327 = vsel %vm319, %v45, 0
    %v330 = vsel %vm319, %v46, 0
    %v333 = vsel %vm319, %v47, 0
    %v336 = vsel %vm319, %v48, 0
    %v339 = vsel %vm319, %v49, 0
    %v342 = vsel %vm319, %v50, 0
    %344 = vmatprep.subr.mxu0 0.0
    %345 = vmatpush1.msra.mxu0 %v279
    %346 = vmatprep.subr.mxu0 0.0
    %347 = vmatpush1.msra.mxu0 %v280
    %348 = vmatprep.subr.mxu0 0.0
    %349 = vmatpush1.msra.mxu0 %v281
    %350 = vmatprep.subr.mxu0 0.0
    %351 = vmatpush1.msra.mxu0 %v282
    %352 = vmatprep.subr.mxu0 0.0
    %353 = vmatpush1.msra.mxu0 %v283
    %354 = vmatprep.subr.mxu0 0.0
    %355 = vmatpush1.msra.mxu0 %v284
    %356 = vmatprep.subr.mxu0 0.0
    %357 = vmatpush1.msra.mxu0 %v285
    %358 = vmatprep.subr.mxu0 0.0
    %359 = vmatpush1.msra.mxu0 %v286
    %360 = vmatprep.subr.mxu0 0.0
    %361 = vmatpush1.msra.mxu0 0.0
    %362 = vmatprep.subr.mxu0 0.0
    %363 = vmatpush1.msra.mxu0 0.0
    %364 = vmatprep.subr.mxu0 0.0
    %365 = vmatpush1.msra.mxu0 0.0
    %366 = vmatprep.subr.mxu0 0.0
    %367 = vmatpush1.msra.mxu0 0.0
    %368 = vmatprep.subr.mxu0 0.0
    %369 = vmatpush1.msra.mxu0 0.0
    %370 = vmatprep.subr.mxu0 0.0
    %371 = vmatpush1.msra.mxu0 0.0
    %372 = vmatprep.subr.mxu0 0.0
    %373 = vmatpush1.msra.mxu0 0.0
    %374 = vmatprep.subr.mxu0 0.0
    %375 = vmatpush1.msra.mxu0 0.0
    %376 = vmatprep.subr.mxu0 0.0
    %377 = vmatpush1.msra.mxu0 0.0
    %378 = vmatprep.subr.mxu0 0.0
    %379 = vmatpush1.msra.mxu0 0.0
    %380 = vmatprep.subr.mxu0 0.0
    %381 = vmatpush1.msra.mxu0 0.0
    %382 = vmatprep.subr.mxu0 0.0
    %383 = vmatpush1.msra.mxu0 0.0
    %384 = vmatprep.subr.mxu0 0.0
    %385 = vmatpush1.msra.mxu0 0.0
    %386 = vmatprep.subr.mxu0 0.0
    %387 = vmatpush1.msra.mxu0 0.0
    %388 = vmatprep.subr.mxu0 0.0
    %389 = vmatpush1.msra.mxu0 0.0
    %390 = vmatprep.subr.mxu0 0.0
    %391 = vmatpush1.msra.mxu0 0.0
    %392 = vmatprep.subr.mxu0 0.0
    %393 = vmatpush1.msra.mxu0 0.0
    %394 = vmatprep.subr.mxu0 0.0
    %395 = vmatpush1.msra.mxu0 0.0
    %396 = vmatprep.subr.mxu0 0.0
    %397 = vmatpush1.msra.mxu0 0.0
    %398 = vmatprep.subr.mxu0 0.0
    %399 = vmatpush1.msra.mxu0 0.0
    %400 = vmatprep.subr.mxu0 0.0
    %401 = vmatpush1.msra.mxu0 0.0
    %402 = vmatprep.subr.mxu0 0.0
    %403 = vmatpush1.msra.mxu0 0.0
    %404 = vmatprep.subr.mxu0 0.0
    %405 = vmatpush1.msra.mxu0 0.0
    %406 = vmatprep.subr.mxu0 0.0
    %407 = vmatpush1.msra.mxu0 0.0
    %408 = vmatprep.mubr.f32.mxu0 0.0
    %409 = vmatmul.mubr.f32.gmra.mrb[0].mxu0 %v321
    %v410 = vpop.f32.mrb[0].mxu0
    %v411 = vadd.f32 %v289, %v410
    %v412 = vpop.f32.mrb[0].mxu0
    %413 = vmatprep.mubr.f32.mxu0 0.0
    %414 = vmatmul.mubr.f32.gmra.mrb[0].mxu0 %v324
    %v415 = vpop.f32.mrb[0].mxu0
    %v416 = vadd.f32 %v293, %v415
    %v417 = vpop.f32.mrb[0].mxu0
    %418 = vmatprep.mubr.f32.mxu0 0.0
    %419 = vmatmul.mubr.f32.gmra.mrb[0].mxu0 %v327
    %v420 = vpop.f32.mrb[0].mxu0
    %v421 = vadd.f32 %v297, %v420
    %v422 = vpop.f32.mrb[0].mxu0
    %423 = vmatprep.mubr.f32.mxu0 0.0
    %424 = vmatmul.mubr.f32.gmra.mrb[0].mxu0 %v330
    %v425 = vpop.f32.mrb[0].mxu0
    %v426 = vadd.f32 %v301, %v425
    %v427 = vpop.f32.mrb[0].mxu0
    %428 = vmatprep.mubr.f32.mxu0 0.0
    %429 = vmatmul.mubr.f32.gmra.mrb[0].mxu0 %v333
    %v430 = vpop.f32.mrb[0].mxu0
    %v431 = vadd.f32 %v305, %v430
    %v432 = vpop.f32.mrb[0].mxu0
    %433 = vmatprep.mubr.f32.mxu0 0.0
    %434 = vmatmul.mubr.f32.gmra.mrb[0].mxu0 %v336
    %v435 = vpop.f32.mrb[0].mxu0
    %v436 = vadd.f32 %v309, %v435
    %v437 = vpop.f32.mrb[0].mxu0
    %438 = vmatprep.mubr.f32.mxu0 0.0
    %439 = vmatmul.mubr.f32.gmra.mrb[0].mxu0 %v339
    %v440 = vpop.f32.mrb[0].mxu0
    %v441 = vadd.f32 %v313, %v440
    %v442 = vpop.f32.mrb[0].mxu0
    %443 = vmatprep.mubr.f32.mxu0 0.0
    %444 = vmatmul.mubr.f32.gmra.mrb[0].mxu0 %v342
    %v445 = vpop.f32.mrb[0].mxu0
    %v446 = vadd.f32 %v317, %v445
    %v447 = vpop.f32.mrb[0].mxu0
    %448 = vdwg.mxu0
    %v449 = vtanh.pop %v411
    %v450 = vtanh.pop %v416
    %v451 = vtanh.pop %v421
    %v452 = vtanh.pop %v426
    %v453 = vtanh.pop %v431
    %v454 = vtanh.pop %v436
    %v455 = vtanh.pop %v441
    %v456 = vtanh.pop %v446
    %458 = vset.pattern.permute.xlu0 2
    %459 = vperm.xlu0 %458, %v60
    %v460 = vpop.permute.xlu0 %459
    %v463 = vsel %vm319, %v51, 0
    %465 = vmatprep.subr.mxu0 0.0
    %466 = vmatpush1.msra.mxu0 %v449
    %467 = vmatprep.subr.mxu0 0.0
    %468 = vmatpush1.msra.mxu0 %v450
    %469 = vmatprep.subr.mxu0 0.0
    %470 = vmatpush1.msra.mxu0 %v451
    %471 = vmatprep.subr.mxu0 0.0
    %472 = vmatpush1.msra.mxu0 %v452
    %473 = vmatprep.subr.mxu0 0.0
    %474 = vmatpush1.msra.mxu0 %v453
    %475 = vmatprep.subr.mxu0 0.0
    %476 = vmatpush1.msra.mxu0 %v454
    %477 = vmatprep.subr.mxu0 0.0
    %478 = vmatpush1.msra.mxu0 %v455
    %479 = vmatprep.subr.mxu0 0.0
    %480 = vmatpush1.msra.mxu0 %v456
    %481 = vmatprep.subr.mxu0 0.0
    %482 = vmatpush1.msra.mxu0 0.0
    %483 = vmatprep.subr.mxu0 0.0
    %484 = vmatpush1.msra.mxu0 0.0
    %485 = vmatprep.subr.mxu0 0.0
    %486 = vmatpush1.msra.mxu0 0.0
    %487 = vmatprep.subr.mxu0 0.0
    %488 = vmatpush1.msra.mxu0 0.0
    %489 = vmatprep.subr.mxu0 0.0
    %490 = vmatpush1.msra.mxu0 0.0
    %491 = vmatprep.subr.mxu0 0.0
    %492 = vmatpush1.msra.mxu0 0.0
    %493 = vmatprep.subr.mxu0 0.0
    %494 = vmatpush1.msra.mxu0 0.0
    %495 = vmatprep.subr.mxu0 0.0
    %496 = vmatpush1.msra.mxu0 0.0
    %497 = vmatprep.subr.mxu0 0.0
    %498 = vmatpush1.msra.mxu0 0.0
    %499 = vmatprep.subr.mxu0 0.0
    %500 = vmatpush1.msra.mxu0 0.0
    %501 = vmatprep.subr.mxu0 0.0
    %502 = vmatpush1.msra.mxu0 0.0
    %503 = vmatprep.subr.mxu0 0.0
    %504 = vmatpush1.msra.mxu0 0.0
    %505 = vmatprep.subr.mxu0 0.0
    %506 = vmatpush1.msra.mxu0 0.0
    %507 = vmatprep.subr.mxu0 0.0
    %508 = vmatpush1.msra.mxu0 0.0
    %509 = vmatprep.subr.mxu0 0.0
    %510 = vmatpush1.msra.mxu0 0.0
    %511 = vmatprep.subr.mxu0 0.0
    %512 = vmatpush1.msra.mxu0 0.0
    %513 = vmatprep.subr.mxu0 0.0
    %514 = vmatpush1.msra.mxu0 0.0
    %515 = vmatprep.subr.mxu0 0.0
    %516 = vmatpush1.msra.mxu0 0.0
    %517 = vmatprep.subr.mxu0 0.0
    %518 = vmatpush1.msra.mxu0 0.0
    %519 = vmatprep.subr.mxu0 0.0
    %520 = vmatpush1.msra.mxu0 0.0
    %521 = vmatprep.subr.mxu0 0.0
    %522 = vmatpush1.msra.mxu0 0.0
    %523 = vmatprep.subr.mxu0 0.0
    %524 = vmatpush1.msra.mxu0 0.0
    %525 = vmatprep.subr.mxu0 0.0
    %526 = vmatpush1.msra.mxu0 0.0
    %527 = vmatprep.subr.mxu0 0.0
    %528 = vmatpush1.msra.mxu0 0.0
    %529 = vmatprep.mubr.f32.mxu0 0.0
    %530 = vmatmul.mubr.f32.gmra.mrb[0].mxu0 %v463
    %v531 = vpop.f32.mrb[0].mxu0
    %v532 = vadd.f32 %v460, %v531
    %v533 = vpop.f32.mrb[0].mxu0
    %534 = vdwg.mxu0
    %vm535 = vcmask 1043456
    %v536 = vsel %vm535, %v532, -inf
    %v537 = vrot.slane %v536, 4
    %v538 = vmax.f32 %v536, %v537
    %v539 = vrot.slane %v538, 2
    %v540 = vmax.f32 %v538, %v539
    %v541 = vrot.slane %v540, 1
    %v542 = vmax.f32 %v540, %v541
    %v543 = vsub.f32 %v532, %v542
    %v544 = vmul.f32 %v543, 1.442695
    %v545 = vpow.pop %v544
    %v546 = vsel %vm535, %v545, 0.0
    %v547 = vrot.slane %v546, 4
    %v548 = vadd.f32 %v546, %v547
    %v549 = vrot.slane %v548, 2
    %v550 = vadd.f32 %v548, %v549
    %v551 = vrot.slane %v550, 1
    %v552 = vadd.f32 %v550, %v551
    %v553 = vlog2.pop %v552
    %v554 = vmul.f32 %v553, 0.6931472
    %v555 = vsub.f32 %v543, %v554
    %v556 = vrcp.pop %v552
    %v557 = vmul.f32 %v545, %v556
    %v558 = vlaneseq
    %v559 = vshrl.u32 %v558, 7
    %v560 = vlaneseq
    %v561 = vshrl.u32 %v560, 7
    %v562 = vsub.s32 0, %v561
    %v563 = vrot.slane %v34, %v562
    %vm564 = vcmp.eq.s32.totalorder %v559, %v563
    %v565 = vsel %vm564, 1, 0
    %v566 = vcvt.s32.f32 %v565
    %v567 = vmul.f32 %v566, %v555
    %v568 = vsel %vm535, %v567, 0.0
    %v569 = vrot.slane %v568, 4
    %v570 = vadd.f32 %v568, %v569
    %v571 = vrot.slane %v570, 2
    %v572 = vadd.f32 %v570, %v571
    %v573 = vrot.slane %v572, 1
    %v574 = vadd.f32 %v572, %v573
    %v575 = vmul.f32 %v557, %v555
    %v576 = vsel %vm535, %v575, 0.0
    %v577 = vrot.slane %v576, 4
    %v578 = vadd.f32 %v576, %v577
    %v579 = vrot.slane %v578, 2
    %v580 = vadd.f32 %v578, %v579
    %v581 = vrot.slane %v580, 1
    %v582 = vadd.f32 %v580, %v581
    %v583 = vsub.f32 0.0, %v582
    %584 = vst [vmem:[#allocation2] sm:$0x1] %v574
    %585 = vst [vmem:[#allocation2 - $0x3] sm:$0x10] %v532
    %586 = vst [vmem:[#allocation2 + $0x2] sm:$0x1] %v583
    // Predicated region
    $region18: #{tpu_custom_call.1} parent=1 // pred_check
      _
    $region19: #{tpu_custom_call.1} parent=1 // pred_check_branch
      %588 = sbr.rel (0) target = $region21
    $region20: #{tpu_custom_call.1} parent=1 // pred_region
      %s590 = ssub.s32 64, 64
      %591 = vsyncadd [#allocation3], %s590
      %s593 = sshll.u32 [#allocation2], 4
      %s594 = int_to_ptr.vmem [resolvable:$true] %s593
      %596 = dma.vmem_to_hbm [thread:$0]  %s594, 64, %s4, [#allocation3]
    $region21: #{tpu_custom_call.1} parent=1 // pred_fallthru
      _
    // Predicated region
    $region22: #{tpu_custom_call.1} parent=1 // pred_check
      _
    $region23: #{tpu_custom_call.1} parent=1 // pred_check_branch
      %598 = sbr.rel (0) target = $region25
    $region24: #{tpu_custom_call.1} parent=1 // pred_region
      %599 = dma.done [#allocation3], 64
    $region25: #{tpu_custom_call.1} parent=1 // pred_fallthru
      _
    %600 = vsyncpa [#allocation3], 1

</llo_original>
